<compile_context>
chip_gen: v6e
topology: v6e:2x2x1
jax: 0.10.0
libtpu: 0.0.40
codegen_flags: <defaults>
</compile_context>

<pallas_src>
import functools

import jax
import jax.numpy as jnp
from jax.experimental import pallas as pl
from jax.experimental.pallas import tpu as pltpu


# --------------------------------------------------------------------------------------
# helpers
# --------------------------------------------------------------------------------------

def _round_up(n, m):
    return ((n + m - 1) // m) * m


def _vmem_capacity_bytes():
    """Physical per-core VMEM capacity, or 0 if it cannot be queried."""
    try:
        cap = int(pltpu.get_tpu_info().vmem_capacity_bytes)
        if cap > 0:
            return cap
    except Exception:
        pass
    return 0


def _resident_spec(block_shape, index_map):
    """Block-invariant operand: request a single-buffered VMEM resident."""
    try:
        return pl.BlockSpec(block_shape, index_map, pipeline_mode=pl.Buffered(1))
    except (TypeError, AttributeError):   # very old jax without pipeline_mode
        return pl.BlockSpec(block_shape, index_map)


def _largest_divisor_tile(total, cap, step=128):
    """Largest multiple of `step` that divides `total` and is <= max(cap, step)."""
    best = None
    t = step
    limit = min(total, max(int(cap), step))
    while t <= limit:
        if total % t == 0:
            best = t
        t += step
    return best


def _layer_norm_f32(x, gamma, beta, eps):
    # Single-pass statistics: the two reductions are independent (no mean -> var chain).
    mean = jnp.mean(x, axis=-1, keepdims=True)
    mean_sq = jnp.mean(x * x, axis=-1, keepdims=True)
    var = jnp.maximum(mean_sq - mean * mean, 0.0)
    return (x - mean) * jax.lax.rsqrt(var + eps) * gamma + beta


def _gelu_exact_f32(h):
    # erf-based GELU, matches torch.nn.functional.gelu default.
    return 0.5 * h * (1.0 + jax.lax.erf(h * 0.7071067811865476))


# --------------------------------------------------------------------------------------
# kernels
# --------------------------------------------------------------------------------------

def _ffn_kernel_resident(x_ref, g_ref, b_ref, w1_ref, b1_ref, w2_ref, b2_ref, o_ref, *, eps):
    """Full weight matrices resident in VMEM; one grid step per token tile."""
    x = x_ref[...].astype(jnp.float32)

    ln = _layer_norm_f32(x, g_ref[...], b_ref[...], eps)

    # dense_i2h: bf16 operands, f32 accumulate on the MXU
    h = jnp.dot(ln.astype(jnp.bfloat16), w1_ref[...], preferred_element_type=jnp.float32)
    h = _gelu_exact_f32(h + b1_ref[...])

    # dense_h2o
    out = jnp.dot(h.astype(jnp.bfloat16), w2_ref[...], preferred_element_type=jnp.float32)

    # dropout p=0.0 -> identity; residual add in f32
    o_ref[...] = (out + b2_ref[...] + x).astype(o_ref.dtype)


def _ffn_kernel_itiled(x_ref, g_ref, b_ref, w1_ref, b1_ref, w2_ref, b2_ref, o_ref,
                       ln_ref, acc_ref, *, eps):
    """Weights streamed in chunks along the intermediate dim; acc over the inner grid axis."""
    k = pl.program_id(1)

    @pl.when(k == 0)
    def _():
        x = x_ref[...].astype(jnp.float32)
        ln_ref[...] = _layer_norm_f32(x, g_ref[...], b_ref[...], eps).astype(jnp.bfloat16)
        acc_ref[...] = jnp.zeros_like(acc_ref)

    h = jnp.dot(ln_ref[...], w1_ref[...], preferred_element_type=jnp.float32)
    h = _gelu_exact_f32(h + b1_ref[...])
    acc_ref[...] += jnp.dot(h.astype(jnp.bfloat16), w2_ref[...],
                            preferred_element_type=jnp.float32)

    @pl.when(k == pl.num_programs(1) - 1)
    def _():
        out = acc_ref[...] + b2_ref[...] + x_ref[...].astype(jnp.float32)
        o_ref[...] = out.astype(o_ref.dtype)


# --------------------------------------------------------------------------------------
# wrapper
# --------------------------------------------------------------------------------------

def reference_ffn(x, gamma, beta, w1_t, b1, w2_t, b2, *,
                  eps=1e-12, dropout=0.0, block_rows=None, intermediate_block=None):
    """ReferenceFFN forward.  x: (..., H). Weights pre-transposed: w1_t (H, I), w2_t (I, H).

    For best performance, pre-convert w1_t / w2_t to bf16 once at parameter-setup time
    (the wrapper only casts if they are not bf16 already).
    """
    if dropout != 0.0:
        # TODO(synk): dropout with p>0 during training not implemented (needs pltpu PRNG).
        raise NotImplementedError("reference_ffn Pallas kernel only supports dropout=0.0")

    orig_shape = x.shape
    H = x.shape[-1]
    I = w1_t.shape[1]
    x2 = x.reshape(-1, H)
    N = x2.shape[0]

    # --- per-generation VMEM budget & tile size ----------------------------------------
    vmem_cap = _vmem_capacity_bytes()
    if vmem_cap:
        vmem_budget = int(vmem_cap * 0.8)             # leave headroom for compiler scratch
        small_vmem = vmem_cap <= 64 * 1024 * 1024     # v7x-class: 64 MiB/TC, 2 TCs
    else:
        vmem_budget = 64 * 1024 * 1024                # conservative fallback
        small_vmem = True

    if block_rows is None:
        block_rows = 256 if small_vmem else 512       # 128 MiB parts take a bigger tile

    tm = min(block_rows, _round_up(N, 8))
    if small_vmem and N > 4 * 8:
        # keep >= 4 token-grid steps so both v7x TensorCores get sharded work
        tm = min(tm, _round_up(pl.cdiv(N, 4), 8))
    grid_m = pl.cdiv(N, tm)                           # ragged last block; no pad/slice

    # --- operands ----------------------------------------------------------------------
    if w1_t.dtype != jnp.bfloat16:
        w1_t = w1_t.astype(jnp.bfloat16)
    if w2_t.dtype != jnp.bfloat16:
        w2_t = w2_t.astype(jnp.bfloat16)
    gamma2 = gamma.reshape(1, H).astype(jnp.float32)
    beta2 = beta.reshape(1, H).astype(jnp.float32)
    b1_2 = b1.reshape(1, I).astype(jnp.float32)
    b2_2 = b2.reshape(1, H).astype(jnp.float32)

    # --- resident vs I-tiled path selection ---------------------------------------------
    bytes_weights = 2 * H * I * 2                         # w1 + w2, bf16, single-buffered
    bytes_act = 2 * 2 * tm * H * x2.dtype.itemsize        # x + out tiles, double-buffered
    bytes_inter = 3 * tm * I * 4                          # (tm, I) f32 intermediates (rough)
    resident_fits = (bytes_weights + bytes_act + bytes_inter) <= vmem_budget

    use_i_tiling = (intermediate_block is not None) or (not resident_fits)
    tI = None
    if use_i_tiling:
        if intermediate_block is not None:
            tI = int(intermediate_block)
            if I % tI != 0 or tI % 128 != 0:
                raise ValueError("intermediate_block must be a multiple of 128 dividing I")
        else:
            fixed = 24 * tm * H                            # ln/acc scratch + x/out tiles
            per_col = 8 * H + 8 * tm                       # 2x double-buffered weight chunks + h
            avail = max(vmem_budget - fixed, 128 * per_col)
            tI = _largest_divisor_tile(I, avail // per_col)
            if tI is None:
                use_i_tiling = False                       # no lane-aligned divisor of I

    compiler_params = pltpu.CompilerParams(
        dimension_semantics=("parallel",) if not use_i_tiling else ("parallel", "arbitrary"),
        vmem_limit_bytes=vmem_budget,
    )
    out_shape = jax.ShapeDtypeStruct((N, H), x.dtype)

    if not use_i_tiling:
        out2 = pl.pallas_call(
            functools.partial(_ffn_kernel_resident, eps=eps),
            out_shape=out_shape,
            grid_spec=pltpu.PrefetchScalarGridSpec(
                num_scalar_prefetch=0,
                grid=(grid_m,),
                in_specs=[
                    pl.BlockSpec((tm, H), lambda i: (i, 0)),          # x tile
                    _resident_spec((1, H), lambda i: (0, 0)),         # gamma
                    _resident_spec((1, H), lambda i: (0, 0)),         # beta
                    _resident_spec((H, I), lambda i: (0, 0)),         # w1 (bf16)
                    _resident_spec((1, I), lambda i: (0, 0)),         # b1
                    _resident_spec((I, H), lambda i: (0, 0)),         # w2 (bf16)
                    _resident_spec((1, H), lambda i: (0, 0)),         # b2
                ],
                out_specs=pl.BlockSpec((tm, H), lambda i: (i, 0)),
            ),
            compiler_params=compiler_params,
        )(x2, gamma2, beta2, w1_t, b1_2, w2_t, b2_2)
    else:
        out2 = pl.pallas_call(
            functools.partial(_ffn_kernel_itiled, eps=eps),
            out_shape=out_shape,
            grid_spec=pltpu.PrefetchScalarGridSpec(
                num_scalar_prefetch=0,
                grid=(grid_m, I // tI),
                in_specs=[
                    pl.BlockSpec((tm, H), lambda i, k: (i, 0)),       # x tile
                    _resident_spec((1, H), lambda i, k: (0, 0)),      # gamma
                    _resident_spec((1, H), lambda i, k: (0, 0)),      # beta
                    pl.BlockSpec((H, tI), lambda i, k: (0, k)),       # w1 chunk (pipelined)
                    pl.BlockSpec((1, tI), lambda i, k: (0, k)),       # b1 chunk
                    pl.BlockSpec((tI, H), lambda i, k: (k, 0)),       # w2 chunk (pipelined)
                    _resident_spec((1, H), lambda i, k: (0, 0)),      # b2
                ],
                out_specs=pl.BlockSpec((tm, H), lambda i, k: (i, 0)),
                scratch_shapes=[pltpu.VMEM((tm, H), jnp.bfloat16),    # LN(x) cache
                                pltpu.VMEM((tm, H), jnp.float32)],    # f32 accumulator
            ),
            compiler_params=compiler_params,
        )(x2, gamma2, beta2, w1_t, b1_2, w2_t, b2_2)

    return out2.reshape(orig_shape)


# --------------------------------------------------------------------------------------
# pure-JAX reference (matches the PyTorch module semantics, f32 end-to-end)
# --------------------------------------------------------------------------------------

def ffn_reference_jax(x, gamma, beta, w1_t, b1, w2_t, b2, eps=1e-12):
    orig_shape = x.shape
    H = x.shape[-1]
    x2 = x.reshape(-1, H).astype(jnp.float32)
    mean = jnp.mean(x2, axis=-1, keepdims=True)
    var = jnp.mean((x2 - mean) ** 2, axis=-1, keepdims=True)
    ln = (x2 - mean) / jnp.sqrt(var + eps) * gamma + beta
    h = ln @ w1_t + b1
    h = 0.5 * h * (1.0 + jax.lax.erf(h / jnp.sqrt(2.0)))
    out = h @ w2_t + b2
    out = out + x2
    return out.reshape(orig_shape)


# --------------------------------------------------------------------------------------
# demo / self-test
# --------------------------------------------------------------------------------------

if __name__ == "__main__":
    # Small shapes implied by the FFN forward: (batch, seq, hidden), intermediate = 2*hidden.
    B, S, H, I = 2, 8, 128, 256

    key = jax.random.PRNGKey(0)
    kx, kw1, kb1, kw2, kb2 = jax.random.split(key, 5)

    x = jax.random.normal(kx, (B, S, H), dtype=jnp.float32)

    # nn.Linear-style init: U(-1/sqrt(fan_in), 1/sqrt(fan_in)); stored pre-transposed (in, out).
    k1 = 1.0 / jnp.sqrt(jnp.float32(H))
    w1_t = jax.random.uniform(kw1, (H, I), jnp.float32, -k1, k1)   # i2h: (H, I)
    b1 = jax.random.uniform(kb1, (I,), jnp.float32, -k1, k1)
    k2 = 1.0 / jnp.sqrt(jnp.float32(I))
    w2_t = jax.random.uniform(kw2, (I, H), jnp.float32, -k2, k2)   # h2o: (I, H)
    b2 = jax.random.uniform(kb2, (H,), jnp.float32, -k2, k2)

    # nn.LayerNorm default params
    gamma = jnp.ones((H,), jnp.float32)
    beta = jnp.zeros((H,), jnp.float32)

    # One-time parameter conversion: matmul operands live in bf16 (no per-call cast pass).
    w1_bf = w1_t.astype(jnp.bfloat16)
    w2_bf = w2_t.astype(jnp.bfloat16)

    ref = ffn_reference_jax(x, gamma, beta, w1_t, b1, w2_t, b2, eps=1e-12)

    # Resident-weight path (auto-selected for these shapes).
    out = reference_ffn(x, gamma, beta, w1_bf, b1, w2_bf, b2, eps=1e-12)
    out = jax.block_until_ready(out)
    assert out.shape == x.shape and out.dtype == x.dtype
    # bf16 matmul operands (f32 accumulate) => loosened tolerance vs the f32 reference.
    assert jnp.allclose(out, ref, rtol=2e-2, atol=2e-2), "resident path mismatch"

    # I-tiled accumulation path (forced here; used automatically when weights exceed VMEM).
    out_t = reference_ffn(x, gamma, beta, w1_bf, b1, w2_bf, b2, eps=1e-12,
                          intermediate_block=128)
    out_t = jax.block_until_ready(out_t)
    assert jnp.allclose(out_t, ref, rtol=2e-2, atol=2e-2), "I-tiled path mismatch"

    print("KERNEL_OK")
</pallas_src>

<mosaic_0001>
module attributes {stable_mosaic.version = 11 : i64} {
  func.func @_ffn_kernel_resident(%arg0: i32, %arg1: memref<16x128xf32, #tpu.memory_space<vmem>>, %arg2: memref<1x128xf32, #tpu.memory_space<vmem>>, %arg3: memref<1x128xf32, #tpu.memory_space<vmem>>, %arg4: memref<128x256xbf16, #tpu.memory_space<vmem>>, %arg5: memref<1x256xf32, #tpu.memory_space<vmem>>, %arg6: memref<256x128xbf16, #tpu.memory_space<vmem>>, %arg7: memref<1x128xf32, #tpu.memory_space<vmem>>, %arg8: memref<16x128xf32, #tpu.memory_space<vmem>>) attributes {dimension_semantics = [#tpu.dimension_semantics<parallel>], iteration_bounds = array<i64: 1>, scalar_prefetch = 0 : i64, scratch_operands = 0 : i64, tpu.core_type = #tpu.core_type<tc>, window_params = [{transform_indices = @transform_0, window_bounds = array<i64: 16, 128>}, {pipeline_mode = #tpu.pipeline_mode<synchronous>, transform_indices = @transform_1, window_bounds = array<i64: 1, 128>}, {pipeline_mode = #tpu.pipeline_mode<synchronous>, transform_indices = @transform_2, window_bounds = array<i64: 1, 128>}, {pipeline_mode = #tpu.pipeline_mode<synchronous>, transform_indices = @transform_3, window_bounds = array<i64: 128, 256>}, {pipeline_mode = #tpu.pipeline_mode<synchronous>, transform_indices = @transform_4, window_bounds = array<i64: 1, 256>}, {pipeline_mode = #tpu.pipeline_mode<synchronous>, transform_indices = @transform_5, window_bounds = array<i64: 256, 128>}, {pipeline_mode = #tpu.pipeline_mode<synchronous>, transform_indices = @transform_6, window_bounds = array<i64: 1, 128>}, {transform_indices = @transform_7, window_bounds = array<i64: 16, 128>}]} {
    %c0 = arith.constant 0 : index
    %c0_0 = arith.constant 0 : index
    %0 = vector.load %arg1[%c0, %c0_0] : memref<16x128xf32, #tpu.memory_space<vmem>>, vector<16x128xf32>
    %c0_1 = arith.constant 0 : index
    %c0_2 = arith.constant 0 : index
    %1 = vector.load %arg2[%c0_1, %c0_2] : memref<1x128xf32, #tpu.memory_space<vmem>>, vector<1x128xf32>
    %c0_3 = arith.constant 0 : index
    %c0_4 = arith.constant 0 : index
    %2 = vector.load %arg3[%c0_3, %c0_4] : memref<1x128xf32, #tpu.memory_space<vmem>>, vector<1x128xf32>
    %cst = arith.constant dense<0.000000e+00> : vector<16xf32>
    %3 = vector.multi_reduction <add>, %0, %cst [1] : vector<16x128xf32> to vector<16xf32>
    %4 = vector.shape_cast %3 : vector<16xf32> to vector<16x1xf32>
    %cst_5 = arith.constant 1.280000e+02 : f32
    %5 = vector.broadcast %cst_5 : f32 to vector<16x1xf32>
    %6 = arith.divf %4, %5 : vector<16x1xf32>
    %7 = arith.mulf %0, %0 : vector<16x128xf32>
    %cst_6 = arith.constant dense<0.000000e+00> : vector<16xf32>
    %8 = vector.multi_reduction <add>, %7, %cst_6 [1] : vector<16x128xf32> to vector<16xf32>
    %9 = vector.shape_cast %8 : vector<16xf32> to vector<16x1xf32>
    %cst_7 = arith.constant 1.280000e+02 : f32
    %10 = vector.broadcast %cst_7 : f32 to vector<16x1xf32>
    %11 = arith.divf %9, %10 : vector<16x1xf32>
    %12 = arith.mulf %6, %6 : vector<16x1xf32>
    %13 = arith.subf %11, %12 : vector<16x1xf32>
    %cst_8 = arith.constant 0.000000e+00 : f32
    %14 = vector.broadcast %cst_8 : f32 to vector<16x1xf32>
    %15 = arith.maximumf %13, %14 : vector<16x1xf32>
    %16 = vector.broadcast %6 : vector<16x1xf32> to vector<16x128xf32>
    %17 = arith.subf %0, %16 : vector<16x128xf32>
    %cst_9 = arith.constant 9.99999996E-13 : f32
    %18 = vector.broadcast %cst_9 : f32 to vector<16x1xf32>
    %19 = arith.addf %15, %18 : vector<16x1xf32>
    %20 = math.rsqrt %19 : vector<16x1xf32>
    %21 = vector.broadcast %20 : vector<16x1xf32> to vector<16x128xf32>
    %22 = arith.mulf %17, %21 : vector<16x128xf32>
    %23 = vector.broadcast %1 : vector<1x128xf32> to vector<16x128xf32>
    %24 = arith.mulf %22, %23 : vector<16x128xf32>
    %25 = vector.broadcast %2 : vector<1x128xf32> to vector<16x128xf32>
    %26 = arith.addf %24, %25 : vector<16x128xf32>
    %27 = arith.truncf %26 : vector<16x128xf32> to vector<16x128xbf16>
    %c0_10 = arith.constant 0 : index
    %c0_11 = arith.constant 0 : index
    %28 = vector.load %arg4[%c0_10, %c0_11] : memref<128x256xbf16, #tpu.memory_space<vmem>>, vector<128x256xbf16>
    %cst_12 = arith.constant dense<0.000000e+00> : vector<16x256xf32>
    %29 = tpu.matmul %27, %28, %cst_12 {dimension_numbers = #tpu.dot_dimension_numbers<[1], [0], [0], [1], [0, 0, 1, 1], [], []>} : vector<16x128xbf16>, vector<128x256xbf16>, vector<16x256xf32> -> vector<16x256xf32>
    %c0_13 = arith.constant 0 : index
    %c0_14 = arith.constant 0 : index
    %30 = vector.load %arg5[%c0_13, %c0_14] : memref<1x256xf32, #tpu.memory_space<vmem>>, vector<1x256xf32>
    %31 = vector.broadcast %30 : vector<1x256xf32> to vector<16x256xf32>
    %32 = arith.addf %29, %31 : vector<16x256xf32>
    %cst_15 = arith.constant 5.000000e-01 : f32
    %33 = vector.broadcast %cst_15 : f32 to vector<16x256xf32>
    %34 = arith.mulf %33, %32 : vector<16x256xf32>
    %cst_16 = arith.constant 0.707106769 : f32
    %35 = vector.broadcast %cst_16 : f32 to vector<16x256xf32>
    %36 = arith.mulf %32, %35 : vector<16x256xf32>
    %37 = math.erf %36 : vector<16x256xf32>
    %cst_17 = arith.constant 1.000000e+00 : f32
    %38 = vector.broadcast %cst_17 : f32 to vector<16x256xf32>
    %39 = arith.addf %38, %37 : vector<16x256xf32>
    %40 = arith.mulf %34, %39 : vector<16x256xf32>
    %41 = arith.truncf %40 : vector<16x256xf32> to vector<16x256xbf16>
    %c0_18 = arith.constant 0 : index
    %c0_19 = arith.constant 0 : index
    %42 = vector.load %arg6[%c0_18, %c0_19] : memref<256x128xbf16, #tpu.memory_space<vmem>>, vector<256x128xbf16>
    %cst_20 = arith.constant dense<0.000000e+00> : vector<16x128xf32>
    %43 = tpu.matmul %41, %42, %cst_20 {dimension_numbers = #tpu.dot_dimension_numbers<[1], [0], [0], [1], [0, 0, 1, 1], [], []>} : vector<16x256xbf16>, vector<256x128xbf16>, vector<16x128xf32> -> vector<16x128xf32>
    %c0_21 = arith.constant 0 : index
    %c0_22 = arith.constant 0 : index
    %44 = vector.load %arg7[%c0_21, %c0_22] : memref<1x128xf32, #tpu.memory_space<vmem>>, vector<1x128xf32>
    %45 = vector.broadcast %44 : vector<1x128xf32> to vector<16x128xf32>
    %46 = arith.addf %43, %45 : vector<16x128xf32>
    %47 = arith.addf %46, %0 : vector<16x128xf32>
    %c0_23 = arith.constant 0 : index
    %c0_24 = arith.constant 0 : index
    %48 = vector.load %arg8[%c0_23, %c0_24] : memref<16x128xf32, #tpu.memory_space<vmem>>, vector<16x128xf32>
    tpu.vector_store %arg8[%c0_23, %c0_24], %47 {strides = array<i32>} : memref<16x128xf32, #tpu.memory_space<vmem>>, vector<16x128xf32>,
    return
  }
  func.func @transform_0(%arg0: i32) -> (i32, i32) {
    %c0_i32 = arith.constant 0 : i32
    %c0_i32_0 = arith.constant 0 : i32
    return %arg0, %c0_i32 : i32, i32
  }
  func.func @transform_1(%arg0: i32) -> (i32, i32) {
    %c0_i32 = arith.constant 0 : i32
    %c0_i32_0 = arith.constant 0 : i32
    %c0_i32_1 = arith.constant 0 : i32
    return %c0_i32, %c0_i32_0 : i32, i32
  }
  func.func @transform_2(%arg0: i32) -> (i32, i32) {
    %c0_i32 = arith.constant 0 : i32
    %c0_i32_0 = arith.constant 0 : i32
    %c0_i32_1 = arith.constant 0 : i32
    return %c0_i32, %c0_i32_0 : i32, i32
  }
  func.func @transform_3(%arg0: i32) -> (i32, i32) {
    %c0_i32 = arith.constant 0 : i32
    %c0_i32_0 = arith.constant 0 : i32
    %c0_i32_1 = arith.constant 0 : i32
    return %c0_i32, %c0_i32_0 : i32, i32
  }
  func.func @transform_4(%arg0: i32) -> (i32, i32) {
    %c0_i32 = arith.constant 0 : i32
    %c0_i32_0 = arith.constant 0 : i32
    %c0_i32_1 = arith.constant 0 : i32
    return %c0_i32, %c0_i32_0 : i32, i32
  }
  func.func @transform_5(%arg0: i32) -> (i32, i32) {
    %c0_i32 = arith.constant 0 : i32
    %c0_i32_0 = arith.constant 0 : i32
    %c0_i32_1 = arith.constant 0 : i32
    return %c0_i32, %c0_i32_0 : i32, i32
  }
  func.func @transform_6(%arg0: i32) -> (i32, i32) {
    %c0_i32 = arith.constant 0 : i32
    %c0_i32_0 = arith.constant 0 : i32
    %c0_i32_1 = arith.constant 0 : i32
    return %c0_i32, %c0_i32_0 : i32, i32
  }
  func.func @transform_7(%arg0: i32) -> (i32, i32) {
    %c0_i32 = arith.constant 0 : i32
    %c0_i32_0 = arith.constant 0 : i32
    return %arg0, %c0_i32 : i32, i32
  }
}

</mosaic_0001>

<llo_original>
// kernel: tpu_custom_call.1
$region0: #{tpu_custom_call.1}
  #allocation0 [shape = 'u32[]', space=smem, size = 0x4, offset = 0x4, fixed_abs, tag = 'smem constant byte address 0x4 - core index']
  #allocation1 [shape = 'u32[144,128]{1,0:T(1,128)}', space=vmem, size = 0x12000, scoped, tag = 'internal scratch']
  %s0 = inlined_call_operand.hbm [shape: f32[16,128], index: 0, kind: input, shape index: {}]
  %s1 = inlined_call_operand.vmem [shape: f32[1,128], index: 1, kind: input, shape index: {}]
  %s2 = inlined_call_operand.hbm [shape: f32[1,128], index: 2, kind: input, shape index: {}]
  %s3 = inlined_call_operand.hbm [shape: bf16[128,256], index: 3, kind: input, shape index: {}]
  %s4 = inlined_call_operand.vmem [shape: f32[1,256], index: 4, kind: input, shape index: {}]
  %s5 = inlined_call_operand.hbm [shape: bf16[256,128], index: 5, kind: input, shape index: {}]
  %s6 = inlined_call_operand.vmem [shape: f32[1,128], index: 6, kind: input, shape index: {}]
  %s7 = inlined_call_operand.hbm [shape: f32[16,128], index: 7, kind: output, shape index: {}]
  %s8 = sld [smem:[#allocation0]]
  $region54: #{tpu_custom_call.1} parent=0
    _
  %s10 = ssub.s32 1, %s8
  %s11 = scalar_select 0, %s10, %s8
  $region1: #{tpu_custom_call.1} parent=0
    #allocation2 [shape = 'u8[8192]{0}', space=vmem, size = 0x2000, scoped, tag = 'input window, operand 0, single buffered']
    #allocation3 [shape = 's32[1]{0}', space=sflag, size = 0x4, scoped, tag = 'scoped memory for tpu_custom_call.1']
    #allocation4 [shape = 's32[1]{0}', space=sflag, size = 0x4, scoped, tag = 'scoped memory for tpu_custom_call.1']
    #allocation5 [shape = 'u8[512]{0}', space=vmem, size = 0x400, scoped, tag = 'input window, operand 2, single buffered']
    #allocation6 [shape = 's32[1]{0}', space=sflag, size = 0x4, scoped, tag = 'scoped memory for tpu_custom_call.1']
    #allocation7 [shape = 'u8[65536]{0}', space=vmem, size = 0x10000, scoped, tag = 'input window, operand 3, single buffered']
    #allocation8 [shape = 'u8[65536]{0}', space=vmem, size = 0x10000, scoped, tag = 'input window, operand 5, single buffered']
    #allocation9 [shape = 's32[1]{0}', space=sflag, size = 0x4, scoped, tag = 'scoped memory for tpu_custom_call.1']
    #allocation10 [shape = 'u8[8192]{0}', space=vmem, size = 0x2000, scoped, tag = 'output window, operand 0, single buffered']
    %12 = vsyncpa [#allocation3], 0
    %13 = vsyncpa [#allocation6], 0
    %14 = vsyncpa [#allocation9], 0
    %15 = vsyncpa [#allocation4], 0
    // Predicated region
    $region2: #{tpu_custom_call.1} parent=1 // pred_check
      _
    $region3: #{tpu_custom_call.1} parent=1 // pred_check_branch
      %17 = sbr.rel (0) target = $region5
    $region4: #{tpu_custom_call.1} parent=1 // pred_region
      %s19 = ssub.s32 256, 256
      %20 = vsyncadd [#allocation3], %s19
      %s21 = sshll.u32 [#allocation2], 4
      %s22 = int_to_ptr.vmem [resolvable:$true] %s21
      %27 = dma.hbm_to_vmem [thread:$0]  %s0, 256, %s22, [#allocation3], 128, 128, 8
    $region5: #{tpu_custom_call.1} parent=1 // pred_fallthru
      _
    // Predicated region
    $region6: #{tpu_custom_call.1} parent=1 // pred_check
      _
    $region7: #{tpu_custom_call.1} parent=1 // pred_check_branch
      %29 = sbr.rel (0) target = $region9
    $region8: #{tpu_custom_call.1} parent=1 // pred_region
      _
    $region9: #{tpu_custom_call.1} parent=1 // pred_fallthru
      _
    // Predicated region
    $region10: #{tpu_custom_call.1} parent=1 // pred_check
      _
    $region11: #{tpu_custom_call.1} parent=1 // pred_check_branch
      %31 = sbr.rel (0) target = $region13
    $region12: #{tpu_custom_call.1} parent=1 // pred_region
      %s33 = ssub.s32 16, 16
      %34 = vsyncadd [#allocation6], %s33
      %s36 = sshll.u32 [#allocation5], 4
      %s37 = int_to_ptr.vmem [resolvable:$true] %s36
      %39 = dma.hbm_to_vmem [thread:$0]  %s2, 16, %s37, [#allocation6]
    $region13: #{tpu_custom_call.1} parent=1 // pred_fallthru
      _
    // Predicated region
    $region14: #{tpu_custom_call.1} parent=1 // pred_check
      _
    $region15: #{tpu_custom_call.1} parent=1 // pred_check_branch
      %41 = sbr.rel (0) target = $region17
    $region16: #{tpu_custom_call.1} parent=1 // pred_region
      %s43 = ssub.s32 2048, 2048
      %44 = vsyncadd [#allocation6], %s43
      %s45 = sshll.u32 [#allocation7], 4
      %s46 = int_to_ptr.vmem [resolvable:$true] %s45
      %51 = dma.hbm_to_vmem [thread:$0]  %s3, 2048, %s46, [#allocation6], 128, 128, 8
    $region17: #{tpu_custom_call.1} parent=1 // pred_fallthru
      _
    // Predicated region
    $region18: #{tpu_custom_call.1} parent=1 // pred_check
      _
    $region19: #{tpu_custom_call.1} parent=1 // pred_check_branch
      %53 = sbr.rel (0) target = $region21
    $region20: #{tpu_custom_call.1} parent=1 // pred_region
      _
    $region21: #{tpu_custom_call.1} parent=1 // pred_fallthru
      _
    // Predicated region
    $region22: #{tpu_custom_call.1} parent=1 // pred_check
      _
    $region23: #{tpu_custom_call.1} parent=1 // pred_check_branch
      %55 = sbr.rel (0) target = $region25
    $region24: #{tpu_custom_call.1} parent=1 // pred_region
      %s57 = ssub.s32 2048, 2048
      %58 = vsyncadd [#allocation9], %s57
      %s59 = sshll.u32 [#allocation8], 4
      %s60 = int_to_ptr.vmem [resolvable:$true] %s59
      %65 = dma.hbm_to_vmem [thread:$0]  %s5, 2048, %s60, [#allocation9], 64, 64, 4
    $region25: #{tpu_custom_call.1} parent=1 // pred_fallthru
      _
    // Predicated region
    $region26: #{tpu_custom_call.1} parent=1 // pred_check
      _
    $region27: #{tpu_custom_call.1} parent=1 // pred_check_branch
      %67 = sbr.rel (0) target = $region29
    $region28: #{tpu_custom_call.1} parent=1 // pred_region
      _
    $region29: #{tpu_custom_call.1} parent=1 // pred_fallthru
      _
    // Predicated region
    $region30: #{tpu_custom_call.1} parent=1 // pred_check
      _
    $region31: #{tpu_custom_call.1} parent=1 // pred_check_branch
      %69 = sbr.rel (0) target = $region33
    $region32: #{tpu_custom_call.1} parent=1 // pred_region
      %70 = dma.done [#allocation3], 256
    $region33: #{tpu_custom_call.1} parent=1 // pred_fallthru
      _
    // Predicated region
    $region34: #{tpu_custom_call.1} parent=1 // pred_check
      _
    $region35: #{tpu_custom_call.1} parent=1 // pred_check_branch
      %72 = sbr.rel (0) target = $region37
    $region36: #{tpu_custom_call.1} parent=1 // pred_region
      %73 = dma.done [#allocation6], 16
    $region37: #{tpu_custom_call.1} parent=1 // pred_fallthru
      _
    // Predicated region
    $region38: #{tpu_custom_call.1} parent=1 // pred_check
      _
    $region39: #{tpu_custom_call.1} parent=1 // pred_check_branch
      %75 = sbr.rel (0) target = $region41
    $region40: #{tpu_custom_call.1} parent=1 // pred_region
      %76 = dma.done [#allocation6], 2048
    $region41: #{tpu_custom_call.1} parent=1 // pred_fallthru
      _
    // Predicated region
    $region42: #{tpu_custom_call.1} parent=1 // pred_check
      _
    $region43: #{tpu_custom_call.1} parent=1 // pred_check_branch
      %78 = sbr.rel (0) target = $region45
    $region44: #{tpu_custom_call.1} parent=1 // pred_region
      %79 = dma.done [#allocation9], 2048
    $region45: #{tpu_custom_call.1} parent=1 // pred_fallthru
      _
    %v81 = vld [vmem:[#allocation2] sm:$0xff]
    %v82 = vld [vmem:[#allocation2 + $0x8] sm:$0xff]
    %v83 = vld [vmem:[%s1] sm:$0x1]
    %v84 = vld [vmem:[#allocation5] sm:$0x1]
    %85 = vadd.xlane.f32.xlu0 %v81
    %v86 = vpop.xlane.xlu0 %85
    %87 = vadd.xlane.f32.xlu0 %v82
    %v88 = vpop.xlane.xlu0 %87
    %v89 = vrcp.pop 128.0
    %v90 = vmul.f32 %v86, %v89
    %v91 = vmul.f32 %v88, %v89
    %v92 = vmul.f32 %v81, %v81
    %v93 = vmul.f32 %v82, %v82
    %94 = vadd.xlane.f32.xlu0 %v92
    %v95 = vpop.xlane.xlu0 %94
    %96 = vadd.xlane.f32.xlu0 %v93
    %v97 = vpop.xlane.xlu0 %96
    %v98 = vmul.f32 %v95, %v89
    %v99 = vmul.f32 %v97, %v89
    %v100 = vmul.f32 %v90, %v90
    %v101 = vmul.f32 %v91, %v91
    %v102 = vsub.f32 %v98, %v100
    %v103 = vsub.f32 %v99, %v101
    %v104 = vmax.f32 %v102, 0.0
    %v105 = vmax.f32 %v103, 0.0
    %v106 = vsub.f32 %v81, %v90
    %v107 = vsub.f32 %v82, %v91
    %v108 = vadd.f32 %v104, 1e-12
    %v109 = vadd.f32 %v105, 1e-12
    %v110 = vrsqrt.pop %v108
    %v111 = vrsqrt.pop %v109
    %v112 = vmul.f32 %v106, %v110
    %v113 = vmul.f32 %v107, %v111
    %v115 = vlaneseq
    %v116 = vshrl.u32 %v115, 7
    %v117 = vsub.s32 0, %v116
    %v118 = vrot.slane %v83, %v117
    %v120 = vmul.f32 %v112, %v118
    %v121 = vmul.f32 %v113, %v118
    %v123 = vlaneseq
    %v124 = vshrl.u32 %v123, 7
    %v125 = vsub.s32 0, %v124
    %v126 = vrot.slane %v84, %v125
    %v128 = vadd.f32 %v120, %v126
    %v129 = vadd.f32 %v121, %v126
    %v130 = vpack.c.bf16 %v129, %v128
    %v131 = vld [vmem:[#allocation7] sm:$0xff]
    %v132 = vld [vmem:[#allocation7 + $0x8] sm:$0xff]
    %v133 = vld [vmem:[#allocation7 + $0x10] sm:$0xff]
    %v134 = vld [vmem:[#allocation7 + $0x18] sm:$0xff]
    %v135 = vld [vmem:[#allocation7 + $0x20] sm:$0xff]
    %v136 = vld [vmem:[#allocation7 + $0x28] sm:$0xff]
    %v137 = vld [vmem:[#allocation7 + $0x30] sm:$0xff]
    %v138 = vld [vmem:[#allocation7 + $0x38] sm:$0xff]
    %v139 = vld [vmem:[#allocation7 + $0x40] sm:$0xff]
    %v140 = vld [vmem:[#allocation7 + $0x48] sm:$0xff]
    %v141 = vld [vmem:[#allocation7 + $0x50] sm:$0xff]
    %v142 = vld [vmem:[#allocation7 + $0x58] sm:$0xff]
    %v143 = vld [vmem:[#allocation7 + $0x60] sm:$0xff]
    %v144 = vld [vmem:[#allocation7 + $0x68] sm:$0xff]
    %v145 = vld [vmem:[#allocation7 + $0x70] sm:$0xff]
    %v146 = vld [vmem:[#allocation7 + $0x78] sm:$0xff]
    %v147 = vld [vmem:[%s4] sm:$0x3]
    %v149 = vlaneseq
    %v150 = vshrl.u32 %v149, 7
    %v151 = vsub.s32 0, %v150
    %v152 = vrot.slane %v147, %v151
    %v153 = vlaneseq
    %v154 = vshrl.u32 %v153, 7
    %v155 = vsub.s32 1, %v154
    %v156 = vrot.slane %v147, %v155
    %v175 = vunpack.c.l.b16 %v131
    %v176 = vunpack.c.h.b16 %v131
    %v177 = vunpack.c.l.b16 %v132
    %v178 = vunpack.c.h.b16 %v132
    %v179 = vunpack.c.l.b16 %v133
    %v180 = vunpack.c.h.b16 %v133
    %v181 = vunpack.c.l.b16 %v134
    %v182 = vunpack.c.h.b16 %v134
    %v183 = vunpack.c.l.b16 %v135
    %v184 = vunpack.c.h.b16 %v135
    %v185 = vunpack.c.l.b16 %v136
    %v186 = vunpack.c.h.b16 %v136
    %v187 = vunpack.c.l.b16 %v137
    %v188 = vunpack.c.h.b16 %v137
    %v189 = vunpack.c.l.b16 %v138
    %v190 = vunpack.c.h.b16 %v138
    %v191 = vunpack.c.l.b16 %v139
    %v192 = vunpack.c.h.b16 %v139
    %v193 = vunpack.c.l.b16 %v140
    %v194 = vunpack.c.h.b16 %v140
    %v195 = vunpack.c.l.b16 %v141
    %v196 = vunpack.c.h.b16 %v141
    %v197 = vunpack.c.l.b16 %v142
    %v198 = vunpack.c.h.b16 %v142
    %v199 = vunpack.c.l.b16 %v143
    %v200 = vunpack.c.h.b16 %v143
    %v201 = vunpack.c.l.b16 %v144
    %v202 = vunpack.c.h.b16 %v144
    %v203 = vunpack.c.l.b16 %v145
    %v204 = vunpack.c.h.b16 %v145
    %v205 = vunpack.c.l.b16 %v146
    %v206 = vunpack.c.h.b16 %v146
    %v207 = vpack.c.b16 %v177, %v175
    %v208 = vpack.c.b16 %v178, %v176
    %v209 = vpack.c.b16 %v181, %v179
    %v210 = vpack.c.b16 %v182, %v180
    %v211 = vpack.c.b16 %v185, %v183
    %v212 = vpack.c.b16 %v186, %v184
    %v213 = vpack.c.b16 %v189, %v187
    %v214 = vpack.c.b16 %v190, %v188
    %v215 = vpack.c.b16 %v193, %v191
    %v216 = vpack.c.b16 %v194, %v192
    %v217 = vpack.c.b16 %v197, %v195
    %v218 = vpack.c.b16 %v198, %v196
    %v219 = vpack.c.b16 %v201, %v199
    %v220 = vpack.c.b16 %v202, %v200
    %v221 = vpack.c.b16 %v205, %v203
    %v222 = vpack.c.b16 %v206, %v204
    %239 = vmatprep.subr.bf16.mxu0 %v222
    %240 = vmatpush1.bf16.msra.mxu0 %v221
    %241 = vmatprep.subr.bf16.mxu0 %v220
    %242 = vmatpush1.bf16.msra.mxu0 %v219
    %243 = vmatprep.subr.bf16.mxu0 %v218
    %244 = vmatpush1.bf16.msra.mxu0 %v217
    %245 = vmatprep.subr.bf16.mxu0 %v216
    %246 = vmatpush1.bf16.msra.mxu0 %v215
    %247 = vmatprep.subr.bf16.mxu0 %v214
    %248 = vmatpush1.bf16.msra.mxu0 %v213
    %249 = vmatprep.subr.bf16.mxu0 %v212
    %250 = vmatpush1.bf16.msra.mxu0 %v211
    %251 = vmatprep.subr.bf16.mxu0 %v210
    %252 = vmatpush1.bf16.msra.mxu0 %v209
    %253 = vmatprep.subr.bf16.mxu0 %v208
    %254 = vmatpush1.bf16.msra.mxu0 %v207
    %255 = vmatprep.subr.bf16.mxu0 0
    %256 = vmatpush2.bf16.msra.mxu0 0
    %257 = vmatprep.subr.bf16.mxu0 0
    %258 = vmatpush2.bf16.msra.mxu0 0
    %259 = vmatprep.subr.bf16.mxu0 0
    %260 = vmatpush2.bf16.msra.mxu0 0
    %261 = vmatprep.subr.bf16.mxu0 0
    %262 = vmatpush2.bf16.msra.mxu0 0
    %263 = vmatprep.subr.bf16.mxu0 0
    %264 = vmatpush2.bf16.msra.mxu0 0
    %265 = vmatprep.subr.bf16.mxu0 0
    %266 = vmatpush2.bf16.msra.mxu0 0
    %267 = vmatprep.subr.bf16.mxu0 0
    %268 = vmatpush2.bf16.msra.mxu0 0
    %269 = vmatprep.subr.bf16.mxu0 0
    %270 = vmatpush2.bf16.msra.mxu0 0
    %271 = vmatprep.mubr.bf16.mxu0 0
    %272 = vmatmul.mubr.bf16.gmra.mxu0 %v130
    %v273 = vpop.f32.mrf.mxu0
    %v274 = vadd.f32 %v152, %v273
    %v275 = vpop.f32.mrf.mxu0
    %v276 = vadd.f32 %v156, %v275
    %v277 = vpop.f32.mrf.mxu0
    %v278 = vadd.f32 %v152, %v277
    %v279 = vpop.f32.mrf.mxu0
    %v280 = vadd.f32 %v156, %v279
    %281 = vdwg.mxu0
    %v282 = vmul.f32 %v274, 0.5
    %v283 = vmul.f32 %v276, 0.5
    %v284 = vmul.f32 %v278, 0.5
    %v285 = vmul.f32 %v280, 0.5
    %v286 = vmul.f32 %v274, 0.70710677
    %v287 = vmul.f32 %v276, 0.70710677
    %v288 = vmul.f32 %v278, 0.70710677
    %v289 = vmul.f32 %v280, 0.70710677
    %v290 = verf.f32.pop %v286
    %v291 = verf.f32.pop %v287
    %v292 = verf.f32.pop %v288
    %v293 = verf.f32.pop %v289
    %v294 = vadd.f32 %v290, 1.0
    %v295 = vadd.f32 %v291, 1.0
    %v296 = vadd.f32 %v292, 1.0
    %v297 = vadd.f32 %v293, 1.0
    %v298 = vmul.f32 %v282, %v294
    %v299 = vmul.f32 %v283, %v295
    %v300 = vmul.f32 %v284, %v296
    %v301 = vmul.f32 %v285, %v297
    %v302 = vpack.c.bf16 %v300, %v298
    %v303 = vpack.c.bf16 %v301, %v299
    %v304 = vld [vmem:[#allocation8] sm:$0xf]
    %v305 = vld [vmem:[#allocation8 + $0x4] sm:$0xf]
    %v306 = vld [vmem:[#allocation8 + $0x8] sm:$0xf]
    %v307 = vld [vmem:[#allocation8 + $0xc] sm:$0xf]
    %v308 = vld [vmem:[#allocation8 + $0x10] sm:$0xf]
    %v309 = vld [vmem:[#allocation8 + $0x14] sm:$0xf]
    %v310 = vld [vmem:[#allocation8 + $0x18] sm:$0xf]
    %v311 = vld [vmem:[#allocation8 + $0x1c] sm:$0xf]
    %v312 = vld [vmem:[#allocation8 + $0x20] sm:$0xf]
    %v313 = vld [vmem:[#allocation8 + $0x24] sm:$0xf]
    %v314 = vld [vmem:[#allocation8 + $0x28] sm:$0xf]
    %v315 = vld [vmem:[#allocation8 + $0x2c] sm:$0xf]
    %v316 = vld [vmem:[#allocation8 + $0x30] sm:$0xf]
    %v317 = vld [vmem:[#allocation8 + $0x34] sm:$0xf]
    %v318 = vld [vmem:[#allocation8 + $0x38] sm:$0xf]
    %v319 = vld [vmem:[#allocation8 + $0x3c] sm:$0xf]
    %v320 = vld [vmem:[#allocation8 + $0x40] sm:$0xf]
    %v321 = vld [vmem:[#allocation8 + $0x44] sm:$0xf]
    %v322 = vld [vmem:[#allocation8 + $0x48] sm:$0xf]
    %v323 = vld [vmem:[#allocation8 + $0x4c] sm:$0xf]
    %v324 = vld [vmem:[#allocation8 + $0x50] sm:$0xf]
    %v325 = vld [vmem:[#allocation8 + $0x54] sm:$0xf]
    %v326 = vld [vmem:[#allocation8 + $0x58] sm:$0xf]
    %v327 = vld [vmem:[#allocation8 + $0x5c] sm:$0xf]
    %v328 = vld [vmem:[#allocation8 + $0x60] sm:$0xf]
    %v329 = vld [vmem:[#allocation8 + $0x64] sm:$0xf]
    %v330 = vld [vmem:[#allocation8 + $0x68] sm:$0xf]
    %v331 = vld [vmem:[#allocation8 + $0x6c] sm:$0xf]
    %v332 = vld [vmem:[#allocation8 + $0x70] sm:$0xf]
    %v333 = vld [vmem:[#allocation8 + $0x74] sm:$0xf]
    %v334 = vld [vmem:[#allocation8 + $0x78] sm:$0xf]
    %v335 = vld [vmem:[#allocation8 + $0x7c] sm:$0xf]
    %v336 = vld [vmem:[%s6] sm:$0x1]
    %v338 = vlaneseq
    %v339 = vshrl.u32 %v338, 7
    %v340 = vsub.s32 0, %v339
    %v341 = vrot.slane %v336, %v340
    %v375 = vunpack.c.l.b16 %v304
    %v376 = vunpack.c.l.b16 %v305
    %v377 = vunpack.c.l.b16 %v306
    %v378 = vunpack.c.l.b16 %v307
    %v379 = vunpack.c.l.b16 %v308
    %v380 = vunpack.c.l.b16 %v309
    %v381 = vunpack.c.l.b16 %v310
    %v382 = vunpack.c.l.b16 %v311
    %v383 = vunpack.c.l.b16 %v312
    %v384 = vunpack.c.l.b16 %v313
    %v385 = vunpack.c.l.b16 %v314
    %v386 = vunpack.c.l.b16 %v315
    %v387 = vunpack.c.l.b16 %v316
    %v388 = vunpack.c.l.b16 %v317
    %v389 = vunpack.c.l.b16 %v318
    %v390 = vunpack.c.l.b16 %v319
    %v391 = vunpack.c.l.b16 %v320
    %v392 = vunpack.c.l.b16 %v321
    %v393 = vunpack.c.l.b16 %v322
    %v394 = vunpack.c.l.b16 %v323
    %v395 = vunpack.c.l.b16 %v324
    %v396 = vunpack.c.l.b16 %v325
    %v397 = vunpack.c.l.b16 %v326
    %v398 = vunpack.c.l.b16 %v327
    %v399 = vunpack.c.l.b16 %v328
    %v400 = vunpack.c.l.b16 %v329
    %v401 = vunpack.c.l.b16 %v330
    %v402 = vunpack.c.l.b16 %v331
    %v403 = vunpack.c.l.b16 %v332
    %v404 = vunpack.c.l.b16 %v333
    %v405 = vunpack.c.l.b16 %v334
    %v406 = vunpack.c.l.b16 %v335
    %v407 = vpack.c.b16 %v376, %v375
    %v408 = vpack.c.b16 %v378, %v377
    %v409 = vpack.c.b16 %v380, %v379
    %v410 = vpack.c.b16 %v382, %v381
    %v411 = vpack.c.b16 %v384, %v383
    %v412 = vpack.c.b16 %v386, %v385
    %v413 = vpack.c.b16 %v388, %v387
    %v414 = vpack.c.b16 %v390, %v389
    %v415 = vpack.c.b16 %v392, %v391
    %v416 = vpack.c.b16 %v394, %v393
    %v417 = vpack.c.b16 %v396, %v395
    %v418 = vpack.c.b16 %v398, %v397
    %v419 = vpack.c.b16 %v400, %v399
    %v420 = vpack.c.b16 %v402, %v401
    %v421 = vpack.c.b16 %v404, %v403
    %v422 = vpack.c.b16 %v406, %v405
    %439 = vmatprep.subr.bf16.mxu0 0
    %440 = vmatpush1.bf16.msra.mxu0 %v414
    %441 = vmatprep.subr.bf16.mxu0 0
    %442 = vmatpush1.bf16.msra.mxu0 %v413
    %443 = vmatprep.subr.bf16.mxu0 0
    %444 = vmatpush1.bf16.msra.mxu0 %v412
    %445 = vmatprep.subr.bf16.mxu0 0
    %446 = vmatpush1.bf16.msra.mxu0 %v411
    %447 = vmatprep.subr.bf16.mxu0 0
    %448 = vmatpush1.bf16.msra.mxu0 %v410
    %449 = vmatprep.subr.bf16.mxu0 0
    %450 = vmatpush1.bf16.msra.mxu0 %v409
    %451 = vmatprep.subr.bf16.mxu0 0
    %452 = vmatpush1.bf16.msra.mxu0 %v408
    %453 = vmatprep.subr.bf16.mxu0 0
    %454 = vmatpush1.bf16.msra.mxu0 %v407
    %455 = vmatprep.subr.bf16.mxu0 0
    %456 = vmatpush2.bf16.msra.mxu0 %v422
    %457 = vmatprep.subr.bf16.mxu0 0
    %458 = vmatpush2.bf16.msra.mxu0 %v421
    %459 = vmatprep.subr.bf16.mxu0 0
    %460 = vmatpush2.bf16.msra.mxu0 %v420
    %461 = vmatprep.subr.bf16.mxu0 0
    %462 = vmatpush2.bf16.msra.mxu0 %v419
    %463 = vmatprep.subr.bf16.mxu0 0
    %464 = vmatpush2.bf16.msra.mxu0 %v418
    %465 = vmatprep.subr.bf16.mxu0 0
    %466 = vmatpush2.bf16.msra.mxu0 %v417
    %467 = vmatprep.subr.bf16.mxu0 0
    %468 = vmatpush2.bf16.msra.mxu0 %v416
    %469 = vmatprep.subr.bf16.mxu0 0
    %470 = vmatpush2.bf16.msra.mxu0 %v415
    %471 = vmatprep.mubr.bf16.mxu0 %v303
    %472 = vmatmul.mubr.bf16.gmra.mxu0 %v302
    %v473 = vpop.f32.mrf.mxu0
    %v474 = vadd.f32 %v341, %v473
    %v475 = vpop.f32.mrf.mxu0
    %v476 = vpop.f32.mrf.mxu0
    %v477 = vadd.f32 %v341, %v476
    %v478 = vpop.f32.mrf.mxu0
    %479 = vdwg.mxu0
    %v480 = vadd.f32 %v474, %v81
    %v481 = vadd.f32 %v477, %v82
    %482 = vst [vmem:[#allocation10] sm:$0xff] %v480
    %483 = vst [vmem:[#allocation10 + $0x8] sm:$0xff] %v481
    // Predicated region
    $region46: #{tpu_custom_call.1} parent=1 // pred_check
      _
    $region47: #{tpu_custom_call.1} parent=1 // pred_check_branch
      %485 = sbr.rel (0) target = $region49
    $region48: #{tpu_custom_call.1} parent=1 // pred_region
      %s487 = ssub.s32 256, 256
      %488 = vsyncadd [#allocation4], %s487
      %s489 = sshll.u32 [#allocation10], 4
      %s490 = int_to_ptr.vmem [resolvable:$true] %s489
      %495 = dma.vmem_to_hbm [thread:$0]  %s490, 256, %s7, [#allocation4], 128, 128, 8
    $region49: #{tpu_custom_call.1} parent=1 // pred_fallthru
      _
    // Predicated region
    $region50: #{tpu_custom_call.1} parent=1 // pred_check
      _
    $region51: #{tpu_custom_call.1} parent=1 // pred_check_branch
      %497 = sbr.rel (0) target = $region53
    $region52: #{tpu_custom_call.1} parent=1 // pred_region
      %498 = dma.done [#allocation4], 256
    $region53: #{tpu_custom_call.1} parent=1 // pred_fallthru
      _
    %499 = vsyncpa [#allocation3], 1
    %500 = vsyncpa [#allocation6], 1
    %501 = vsyncpa [#allocation9], 1
    %502 = vsyncpa [#allocation4], 1

</llo_original>
